<compile_context>
chip_gen: v7x
topology: tpu7x:2x2x1
jax: 0.10.0
libtpu: 0.0.40
codegen_flags: <defaults>
</compile_context>

<pallas_src>
import math

import jax
import jax.numpy as jnp
from jax.experimental import pallas as pl
from jax.experimental.pallas import tpu as pltpu


def _round_up(n, m):
    return ((n + m - 1) // m) * m


def _vmem_capacity_bytes():
    """Per-core VMEM capacity; conservative 64 MiB (v7x) fallback if the query fails."""
    try:
        info = pltpu.get_tpu_info()
        cap = getattr(info, "vmem_capacity_bytes", None)
        if cap:
            return int(cap)
    except Exception:
        pass
    return 64 << 20


_VMEM_CAP = _vmem_capacity_bytes()
# leave headroom under physical per-core VMEM for Mosaic internal scratch
_VMEM_LIMIT = min(int(_VMEM_CAP * 3 // 4), 100 << 20)
# one bf16 weight tile cap (double-buffered by the pipeline) — chip aware
_WEIGHT_TILE_BYTES = max(_VMEM_CAP // 10, 2 << 20)


def _pick_h_tile(M, H, max_tile_bytes=None):
    """Largest tile of H (preferring multiples of 256 for the 256x256 MXU, falling back
    to 128) that divides H and keeps one bf16 (M, tile_h) weight tile under the chip-aware
    byte cap."""
    if max_tile_bytes is None:
        max_tile_bytes = _WEIGHT_TILE_BYTES
    for gran in (256, 128):
        if H % gran != 0:
            continue
        th = min(H, max(gran, (max_tile_bytes // (2 * M)) // gran * gran))
        while th > 0 and H % th != 0:
            th -= gran
        if th >= gran:
            return th
    return H


# ----------------------------- gate logits kernel ---------------------------------------

def _gate_logits_kernel(x_ref, wg_ref, o_ref):
    # x: (tS, M), wg: (M, E_pad) -> logits (tS, E_pad) f32 (lane-dense output)
    o_ref[...] = jnp.dot(x_ref[...], wg_ref[...], preferred_element_type=jnp.float32)


def gate_logits(x, wg):
    S, M = x.shape
    E = wg.shape[1]
    E_pad = _round_up(E, 128)                          # lane-dense output (no vst.msk)
    wg_pad = jnp.pad(wg, ((0, 0), (0, E_pad - E))).astype(x.dtype)
    tS = min(512, _round_up(S, 8))                     # HBM-roofline friendly token tile
    logits_pad = pl.pallas_call(
        _gate_logits_kernel,
        out_shape=jax.ShapeDtypeStruct((S, E_pad), jnp.float32),
        grid_spec=pltpu.PrefetchScalarGridSpec(
            num_scalar_prefetch=0,
            grid=(pl.cdiv(S, tS),),
            in_specs=[pl.BlockSpec((tS, M), lambda i: (i, 0)),
                      pl.BlockSpec((M, E_pad), lambda i: (0, 0))],
            out_specs=pl.BlockSpec((tS, E_pad), lambda i: (i, 0)),
        ),
        compiler_params=pltpu.CompilerParams(
            dimension_semantics=("parallel",),
            vmem_limit_bytes=_VMEM_LIMIT),
    )(x, wg_pad)
    return logits_pad[:, :E]


# ----------------------------- expert FFN kernel (dispatch + MLP) ------------------------

def _expert_ffn_kernel(disp_ref, x_ref, w1_ref, b1_ref, w2_ref, b2_ref,
                       y_out_ref, xe_ref, yacc_ref):
    hk = pl.program_id(1)
    last_h = pl.num_programs(1) - 1

    @pl.when(hk == 0)
    def _():
        # dispatch: (C, S) @ (S, M) -> per-expert token buffer (C, M); once per expert
        xe = jnp.dot(disp_ref[0], x_ref[...], preferred_element_type=jnp.float32)
        xe_ref[...] = xe.astype(xe_ref.dtype)
        yacc_ref[...] = jnp.zeros_like(yacc_ref)

    # expert FFN on this H tile (bf16 MXU matmuls, f32 accumulation / bias / gelu)
    h = jnp.dot(xe_ref[...], w1_ref[0], preferred_element_type=jnp.float32) + b1_ref[0]
    h = jax.nn.gelu(h, approximate=True)
    yacc_ref[...] += jnp.dot(h.astype(w2_ref.dtype), w2_ref[0],
                             preferred_element_type=jnp.float32)

    @pl.when(hk == last_h)
    def _():
        y_out_ref[0] = (yacc_ref[...] + b2_ref[0]).astype(y_out_ref.dtype)


def moe_expert_ffn(disp_ecs, x_bf, w1, b1, w2, b2, tile_h):
    E, C, S = disp_ecs.shape
    M = x_bf.shape[1]
    H = w1.shape[2]
    assert H % tile_h == 0
    KH = H // tile_h
    return pl.pallas_call(
        _expert_ffn_kernel,
        out_shape=jax.ShapeDtypeStruct((E, C, M), jnp.bfloat16),
        grid_spec=pltpu.PrefetchScalarGridSpec(
            num_scalar_prefetch=0,
            grid=(E, KH),
            in_specs=[
                pl.BlockSpec((1, C, S), lambda e, h: (e, 0, 0)),       # dispatch (E,C,S)
                pl.BlockSpec((S, M), lambda e, h: (0, 0)),             # tokens (S,M) bf16
                pl.BlockSpec((1, M, tile_h), lambda e, h: (e, 0, h)),  # w1 H-tile
                pl.BlockSpec((1, 1, tile_h), lambda e, h: (e, 0, h)),  # b1 H-tile
                pl.BlockSpec((1, tile_h, M), lambda e, h: (e, h, 0)),  # w2 H-tile
                pl.BlockSpec((1, 1, M), lambda e, h: (e, 0, 0)),       # b2
            ],
            out_specs=pl.BlockSpec((1, C, M), lambda e, h: (e, 0, 0)),
            scratch_shapes=[pltpu.VMEM((C, M), jnp.bfloat16),   # xe: expert token buffer
                            pltpu.VMEM((C, M), jnp.float32)],   # y : FFN accumulator
        ),
        compiler_params=pltpu.CompilerParams(
            # E is safe to parallelize: each expert owns its own output block and the
            # xe / y scratch are re-initialized at hk == 0 for every expert.
            dimension_semantics=("parallel", "arbitrary"),
            vmem_limit_bytes=_VMEM_LIMIT),
    )(disp_ecs, x_bf, w1, b1, w2, b2)


# ----------------------------- combine kernel (fully tiled output) -----------------------

def _combine_kernel(comb_ref, y_ref, out_ref, acc_ref):
    e = pl.program_id(2)

    @pl.when(e == 0)
    def _():
        acc_ref[...] = jnp.zeros_like(acc_ref)

    # combine: (tS, C) @ (C, tM), f32 accumulation over experts
    acc_ref[...] += jnp.dot(comb_ref[0], y_ref[0], preferred_element_type=jnp.float32)

    @pl.when(e == pl.num_programs(2) - 1)
    def _():
        out_ref[...] = acc_ref[...].astype(out_ref.dtype)


def moe_combine(comb_esc, y_all, out_dtype, tile_s=512, tile_m=512):
    E, S, C = comb_esc.shape
    M = y_all.shape[2]
    tS = min(tile_s, _round_up(S, 8))
    tM = min(tile_m, _round_up(M, 128))
    return pl.pallas_call(
        _combine_kernel,
        out_shape=jax.ShapeDtypeStruct((S, M), out_dtype),
        grid_spec=pltpu.PrefetchScalarGridSpec(
            num_scalar_prefetch=0,
            grid=(pl.cdiv(S, tS), pl.cdiv(M, tM), E),
            in_specs=[
                pl.BlockSpec((1, tS, C), lambda s, m, e: (e, s, 0)),   # combine (E,S,C)
                pl.BlockSpec((1, C, tM), lambda s, m, e: (e, 0, m)),   # expert out (E,C,M)
            ],
            out_specs=pl.BlockSpec((tS, tM), lambda s, m, e: (s, m)),
            scratch_shapes=[pltpu.VMEM((tS, tM), jnp.float32)],
        ),
        compiler_params=pltpu.CompilerParams(
            dimension_semantics=("parallel", "parallel", "arbitrary"),
            vmem_limit_bytes=_VMEM_LIMIT),
    )(comb_esc, y_all)


# ----------------------------- gating (plain-JAX glue) ----------------------------------

def top1_gate(x2d, wg, capacity_factor, min_capacity):
    """DeepSpeed top1gating (no RTS noise, drop_tokens=True, used_token=None)."""
    S, M = x2d.shape
    E = wg.shape[1]
    logits = gate_logits(x2d, wg)                               # Pallas matmul (f32 acc)
    gates = jax.nn.softmax(logits, axis=1)

    capacity = max(int(math.ceil((S / E) * capacity_factor)), int(min_capacity))
    c_pad = _round_up(capacity, 128)      # lane/MXU-friendly capacity (extra slots unused)

    indices1_s = jnp.argmax(gates, axis=1)
    mask1 = jax.nn.one_hot(indices1_s, E, dtype=jnp.int32)

    exp_counts = jnp.sum(mask1, axis=0)                         # before capacity drop

    me = jnp.mean(gates, axis=0)
    ce = jnp.mean(mask1.astype(jnp.float32), axis=0)
    l_aux = jnp.sum(me * ce) * E

    # capacity truncation, priority = token order (RTS noise skipped -> deterministic)
    locations1 = jnp.cumsum(mask1, axis=0) - 1
    mask1 = mask1 * (locations1 < capacity).astype(jnp.int32)
    locations1_s = jnp.sum(locations1 * mask1, axis=1)

    # build directly in expert-major *bf16* layouts (single HBM materialization each;
    # one-hot products make the bf16 einsums exact)
    mask1_b = mask1.astype(jnp.bfloat16)
    gates_b = (gates * mask1.astype(jnp.float32)).astype(jnp.bfloat16)
    loc_sc_b = jax.nn.one_hot(locations1_s, c_pad, dtype=jnp.bfloat16)

    disp_ecs = jnp.einsum("se,sc->ecs", mask1_b, loc_sc_b)      # (E, C, S) bf16
    comb_esc = jnp.einsum("se,sc->esc", gates_b, loc_sc_b)      # (E, S, C) bf16
    return l_aux, comb_esc, disp_ecs, exp_counts, c_pad


# ----------------------------- MoE module -----------------------------------------------

class MoEPallas:
    def __init__(self, hidden_size, num_experts=4, ffn_mult=4, k=1,
                 capacity_factor=1.0, min_capacity=4, tile_h=None, key=None):
        assert k == 1, "only top-1 gating implemented"
        self.hidden_size = hidden_size
        self.num_experts = num_experts
        self.ffn_hidden = ffn_mult * hidden_size
        self.capacity_factor = capacity_factor
        self.min_capacity = min_capacity
        self.tile_h = tile_h if tile_h is not None else _pick_h_tile(hidden_size,
                                                                     self.ffn_hidden)

        key = jax.random.PRNGKey(0) if key is None else key
        k0, k1, k2, k3, k4 = jax.random.split(key, 5)
        E, M, H = num_experts, hidden_size, self.ffn_hidden
        s = 0.02
        self.wg = (s * jax.random.normal(k0, (M, E))).astype(jnp.float32)        # gate
        self.w1 = (s * jax.random.normal(k1, (E, M, H))).astype(jnp.bfloat16)
        self.b1 = (s * jax.random.normal(k2, (E, 1, H))).astype(jnp.float32)
        self.w2 = (s * jax.random.normal(k3, (E, H, M))).astype(jnp.bfloat16)
        self.b2 = (s * jax.random.normal(k4, (E, 1, M))).astype(jnp.float32)

    def __call__(self, hidden_states, used_token=None):
        # TODO(synk): used_token masking not wired (None in this config).
        B, T, M = hidden_states.shape
        x2d = hidden_states.reshape(-1, M)                      # (S, M), native dtype
        x_bf = x2d.astype(jnp.bfloat16)                         # single bf16 token copy

        l_aux, comb_esc, disp_ecs, exp_counts, C = top1_gate(
            x2d.astype(jnp.float32), self.wg, self.capacity_factor, self.min_capacity)

        y_all = moe_expert_ffn(disp_ecs, x_bf, self.w1, self.b1, self.w2, self.b2,
                               self.tile_h)                     # (E, C, M) bf16
        out = moe_combine(comb_esc, y_all, hidden_states.dtype)  # (S, M)

        return out.reshape(B, T, M), l_aux, exp_counts


# ----------------------------- reference (pure JAX, no Pallas) ---------------------------

def moe_reference(moe, hidden_states):
    B, T, M = hidden_states.shape
    S = B * T
    E = moe.num_experts
    x = hidden_states.reshape(-1, M).astype(jnp.float32)

    # gating (independent of the Pallas gate kernel)
    logits = jnp.dot(x, moe.wg, precision=jax.lax.Precision.HIGHEST)
    gates = jax.nn.softmax(logits, axis=1)
    capacity = max(int(math.ceil((S / E) * moe.capacity_factor)), int(moe.min_capacity))
    c_pad = _round_up(capacity, 128)
    indices1_s = jnp.argmax(gates, axis=1)
    mask1 = jax.nn.one_hot(indices1_s, E, dtype=jnp.int32)
    exp_counts = jnp.sum(mask1, axis=0)
    me = jnp.mean(gates, axis=0)
    ce = jnp.mean(mask1.astype(jnp.float32), axis=0)
    l_aux = jnp.sum(me * ce) * E
    locations1 = jnp.cumsum(mask1, axis=0) - 1
    mask1 = mask1 * (locations1 < capacity).astype(jnp.int32)
    locations1_s = jnp.sum(locations1 * mask1, axis=1)
    mask1_f = mask1.astype(jnp.float32)
    gates_masked = gates * mask1_f
    locations_sc = jax.nn.one_hot(locations1_s, c_pad, dtype=jnp.float32)
    combine_sec = jnp.einsum("se,sc->sec", gates_masked, locations_sc)    # (S, E, C)
    dispatch_sec = (combine_sec > 0).astype(jnp.float32)

    # expert compute (bf16 matmuls with f32 accumulation, same as the kernels)
    xb = x.astype(jnp.bfloat16)
    d = dispatch_sec.astype(jnp.bfloat16)
    c = combine_sec.astype(jnp.bfloat16)
    xe = jnp.einsum("sec,sm->ecm", d, xb,
                    preferred_element_type=jnp.float32).astype(jnp.bfloat16)
    h = jnp.einsum("ecm,emh->ech", xe, moe.w1,
                   preferred_element_type=jnp.float32) + moe.b1
    h = jax.nn.gelu(h, approximate=True)
    y = jnp.einsum("ech,ehm->ecm", h.astype(jnp.bfloat16), moe.w2,
                   preferred_element_type=jnp.float32) + moe.b2
    out = jnp.einsum("sec,ecm->sm", c, y.astype(jnp.bfloat16),
                     preferred_element_type=jnp.float32)
    return out.reshape(B, T, M), l_aux, exp_counts


# ----------------------------- main ------------------------------------------------------

if __name__ == "__main__":
    batch, seq, hidden = 2, 8, 128
    num_experts = 4

    key = jax.random.PRNGKey(0)
    k_in, k_par = jax.random.split(key)
    hidden_states = jax.random.normal(k_in, (batch, seq, hidden), dtype=jnp.float32)

    # tile_h=256 exercises the H-tiled FFN grid (H = 4*128 = 512 -> 2 H-steps per expert)
    moe = MoEPallas(hidden_size=hidden, num_experts=num_experts, key=k_par, tile_h=256)

    out, l_aux, exp_counts = moe(hidden_states)
    (out, l_aux, exp_counts) = jax.block_until_ready((out, l_aux, exp_counts))

    # sanity check against a pure-JAX reference (no Pallas anywhere in the reference path)
    ref_out, ref_laux, ref_counts = moe_reference(moe, hidden_states)
    assert out.shape == hidden_states.shape
    assert jnp.allclose(out, ref_out, atol=2e-3, rtol=2e-3), \
        float(jnp.max(jnp.abs(out - ref_out)))
    assert jnp.allclose(l_aux, ref_laux, atol=1e-4)
    assert jnp.array_equal(exp_counts, ref_counts)

    print("KERNEL_OK")
</pallas_src>

<mosaic_0001>
module attributes {stable_mosaic.version = 11 : i64} {
  func.func @_gate_logits_kernel(%arg0: i32, %arg1: memref<16x128xf32, #tpu.memory_space<vmem>>, %arg2: memref<128x128xf32, #tpu.memory_space<vmem>>, %arg3: memref<16x128xf32, #tpu.memory_space<vmem>>) attributes {dimension_semantics = [#tpu.dimension_semantics<parallel>], iteration_bounds = array<i64: 1>, scalar_prefetch = 0 : i64, scratch_operands = 0 : i64, tpu.core_type = #tpu.core_type<tc>, window_params = [{transform_indices = @transform_0, window_bounds = array<i64: 16, 128>}, {pipeline_mode = #tpu.pipeline_mode<synchronous>, transform_indices = @transform_1, window_bounds = array<i64: 128, 128>}, {transform_indices = @transform_2, window_bounds = array<i64: 16, 128>}]} {
    %c0 = arith.constant 0 : index
    %c0_0 = arith.constant 0 : index
    %0 = vector.load %arg1[%c0, %c0_0] : memref<16x128xf32, #tpu.memory_space<vmem>>, vector<16x128xf32>
    %c0_1 = arith.constant 0 : index
    %c0_2 = arith.constant 0 : index
    %1 = vector.load %arg2[%c0_1, %c0_2] : memref<128x128xf32, #tpu.memory_space<vmem>>, vector<128x128xf32>
    %cst = arith.constant dense<0.000000e+00> : vector<16x128xf32>
    %2 = tpu.matmul %0, %1, %cst {dimension_numbers = #tpu.dot_dimension_numbers<[1], [0], [0], [1], [0, 0, 1, 1], [], []>} : vector<16x128xf32>, vector<128x128xf32>, vector<16x128xf32> -> vector<16x128xf32>
    %c0_3 = arith.constant 0 : index
    %c0_4 = arith.constant 0 : index
    %3 = vector.load %arg3[%c0_3, %c0_4] : memref<16x128xf32, #tpu.memory_space<vmem>>, vector<16x128xf32>
    tpu.vector_store %arg3[%c0_3, %c0_4], %2 {strides = array<i32>} : memref<16x128xf32, #tpu.memory_space<vmem>>, vector<16x128xf32>,
    return
  }
  func.func @transform_0(%arg0: i32) -> (i32, i32) {
    %c0_i32 = arith.constant 0 : i32
    %c0_i32_0 = arith.constant 0 : i32
    return %arg0, %c0_i32 : i32, i32
  }
  func.func @transform_1(%arg0: i32) -> (i32, i32) {
    %c0_i32 = arith.constant 0 : i32
    %c0_i32_0 = arith.constant 0 : i32
    %c0_i32_1 = arith.constant 0 : i32
    return %c0_i32, %c0_i32_0 : i32, i32
  }
  func.func @transform_2(%arg0: i32) -> (i32, i32) {
    %c0_i32 = arith.constant 0 : i32
    %c0_i32_0 = arith.constant 0 : i32
    return %arg0, %c0_i32 : i32, i32
  }
}

</mosaic_0001>

<llo_original>
// kernel: tpu_custom_call.1
$region0: #{tpu_custom_call.1}
  #allocation0 [shape = 'u32[]', space=smem, size = 0x4, offset = 0x4, fixed_abs, tag = 'smem constant byte address 0x4 - core index']
  #allocation1 [shape = 'u32[144,128]{1,0:T(1,128)}', space=vmem, size = 0x12000, scoped, tag = 'internal scratch']
  %s0 = inlined_call_operand.hbm [shape: f32[16,128], index: 0, kind: input, shape index: {}]
  %s1 = inlined_call_operand.hbm [shape: f32[128,128], index: 1, kind: input, shape index: {}]
  %s2 = inlined_call_operand.hbm [shape: f32[16,128], index: 2, kind: output, shape index: {}]
  %s3 = sld [smem:[#allocation0]]
  $region26: #{tpu_custom_call.1} parent=0
    _
  %s5 = ssub.s32 1, %s3
  %s6 = scalar_select 0, %s5, %s3
  $region1: #{tpu_custom_call.1} parent=0
    #allocation2 [shape = 'u8[8192]{0}', space=vmem, size = 0x2000, scoped, tag = 'input window, operand 0, single buffered']
    #allocation3 [shape = 's32[1]{0}', space=sflag, size = 0x4, scoped, tag = 'scoped memory for tpu_custom_call.1']
    #allocation4 [shape = 's32[1]{0}', space=sflag, size = 0x4, scoped, tag = 'scoped memory for tpu_custom_call.1']
    #allocation5 [shape = 'u8[65536]{0}', space=vmem, size = 0x10000, scoped, tag = 'input window, operand 1, single buffered']
    #allocation6 [shape = 's32[1]{0}', space=sflag, size = 0x4, scoped, tag = 'scoped memory for tpu_custom_call.1']
    #allocation7 [shape = 'u8[8192]{0}', space=vmem, size = 0x2000, scoped, tag = 'output window, operand 0, single buffered']
    %7 = vsyncpa [#allocation3], 0
    %8 = vsyncpa [#allocation6], 0
    %9 = vsyncpa [#allocation4], 0
    // Predicated region
    $region2: #{tpu_custom_call.1} parent=1 // pred_check
      _
    $region3: #{tpu_custom_call.1} parent=1 // pred_check_branch
      %11 = sbr.rel (0) target = $region5
    $region4: #{tpu_custom_call.1} parent=1 // pred_region
      %s13 = ssub.s32 256, 256
      %14 = vsyncadd [#allocation3], %s13
      %s15 = sshll.u32 [#allocation2], 4
      %s16 = int_to_ptr.vmem [resolvable:$true] %s15
      %21 = dma.hbm_to_vmem [thread:$0]  %s0, 256, %s16, [#allocation3], 128, 128, 8
    $region5: #{tpu_custom_call.1} parent=1 // pred_fallthru
      _
    // Predicated region
    $region6: #{tpu_custom_call.1} parent=1 // pred_check
      _
    $region7: #{tpu_custom_call.1} parent=1 // pred_check_branch
      %23 = sbr.rel (0) target = $region9
    $region8: #{tpu_custom_call.1} parent=1 // pred_region
      %s25 = ssub.s32 2048, 2048
      %26 = vsyncadd [#allocation6], %s25
      %s27 = sshll.u32 [#allocation5], 4
      %s28 = int_to_ptr.vmem [resolvable:$true] %s27
      %33 = dma.hbm_to_vmem [thread:$0]  %s1, 2048, %s28, [#allocation6], 128, 128, 8
    $region9: #{tpu_custom_call.1} parent=1 // pred_fallthru
      _
    // Predicated region
    $region10: #{tpu_custom_call.1} parent=1 // pred_check
      _
    $region11: #{tpu_custom_call.1} parent=1 // pred_check_branch
      %35 = sbr.rel (0) target = $region13
    $region12: #{tpu_custom_call.1} parent=1 // pred_region
      %36 = dma.done [#allocation3], 256
    $region13: #{tpu_custom_call.1} parent=1 // pred_fallthru
      _
    // Predicated region
    $region14: #{tpu_custom_call.1} parent=1 // pred_check
      _
    $region15: #{tpu_custom_call.1} parent=1 // pred_check_branch
      %38 = sbr.rel (0) target = $region17
    $region16: #{tpu_custom_call.1} parent=1 // pred_region
      %39 = dma.done [#allocation6], 2048
    $region17: #{tpu_custom_call.1} parent=1 // pred_fallthru
      _
    %v40 = vld [vmem:[#allocation2] sm:$0xff]
    %v41 = vld [vmem:[#allocation2 + $0x8] sm:$0xff]
    %v42 = vld [vmem:[#allocation5] sm:$0xff]
    %v43 = vld [vmem:[#allocation5 + $0x8] sm:$0xff]
    %v44 = vld [vmem:[#allocation5 + $0x10] sm:$0xff]
    %v45 = vld [vmem:[#allocation5 + $0x18] sm:$0xff]
    %v46 = vld [vmem:[#allocation5 + $0x20] sm:$0xff]
    %v47 = vld [vmem:[#allocation5 + $0x28] sm:$0xff]
    %v48 = vld [vmem:[#allocation5 + $0x30] sm:$0xff]
    %v49 = vld [vmem:[#allocation5 + $0x38] sm:$0xff]
    %v50 = vld [vmem:[#allocation5 + $0x40] sm:$0xff]
    %v51 = vld [vmem:[#allocation5 + $0x48] sm:$0xff]
    %v52 = vld [vmem:[#allocation5 + $0x50] sm:$0xff]
    %v53 = vld [vmem:[#allocation5 + $0x58] sm:$0xff]
    %v54 = vld [vmem:[#allocation5 + $0x60] sm:$0xff]
    %v55 = vld [vmem:[#allocation5 + $0x68] sm:$0xff]
    %v56 = vld [vmem:[#allocation5 + $0x70] sm:$0xff]
    %v57 = vld [vmem:[#allocation5 + $0x78] sm:$0xff]
    %58 = vmatprep.subr.mxu0 0.0
    %59 = vmatpush1.msra.mxu0 %v42
    %60 = vmatprep.subr.mxu0 0.0
    %61 = vmatpush1.msra.mxu0 %v43
    %62 = vmatprep.subr.mxu0 0.0
    %63 = vmatpush1.msra.mxu0 %v44
    %64 = vmatprep.subr.mxu0 0.0
    %65 = vmatpush1.msra.mxu0 %v45
    %66 = vmatprep.subr.mxu0 0.0
    %67 = vmatpush1.msra.mxu0 %v46
    %68 = vmatprep.subr.mxu0 0.0
    %69 = vmatpush1.msra.mxu0 %v47
    %70 = vmatprep.subr.mxu0 0.0
    %71 = vmatpush1.msra.mxu0 %v48
    %72 = vmatprep.subr.mxu0 0.0
    %73 = vmatpush1.msra.mxu0 %v49
    %74 = vmatprep.subr.mxu0 0.0
    %75 = vmatpush1.msra.mxu0 %v50
    %76 = vmatprep.subr.mxu0 0.0
    %77 = vmatpush1.msra.mxu0 %v51
    %78 = vmatprep.subr.mxu0 0.0
    %79 = vmatpush1.msra.mxu0 %v52
    %80 = vmatprep.subr.mxu0 0.0
    %81 = vmatpush1.msra.mxu0 %v53
    %82 = vmatprep.subr.mxu0 0.0
    %83 = vmatpush1.msra.mxu0 %v54
    %84 = vmatprep.subr.mxu0 0.0
    %85 = vmatpush1.msra.mxu0 %v55
    %86 = vmatprep.subr.mxu0 0.0
    %87 = vmatpush1.msra.mxu0 %v56
    %88 = vmatprep.subr.mxu0 0.0
    %89 = vmatpush1.msra.mxu0 %v57
    %90 = vmatprep.subr.mxu0 0.0
    %91 = vmatpush1.msra.mxu0 0.0
    %92 = vmatprep.subr.mxu0 0.0
    %93 = vmatpush1.msra.mxu0 0.0
    %94 = vmatprep.subr.mxu0 0.0
    %95 = vmatpush1.msra.mxu0 0.0
    %96 = vmatprep.subr.mxu0 0.0
    %97 = vmatpush1.msra.mxu0 0.0
    %98 = vmatprep.subr.mxu0 0.0
    %99 = vmatpush1.msra.mxu0 0.0
    %100 = vmatprep.subr.mxu0 0.0
    %101 = vmatpush1.msra.mxu0 0.0
    %102 = vmatprep.subr.mxu0 0.0
    %103 = vmatpush1.msra.mxu0 0.0
    %104 = vmatprep.subr.mxu0 0.0
    %105 = vmatpush1.msra.mxu0 0.0
    %106 = vmatprep.subr.mxu0 0.0
    %107 = vmatpush1.msra.mxu0 0.0
    %108 = vmatprep.subr.mxu0 0.0
    %109 = vmatpush1.msra.mxu0 0.0
    %110 = vmatprep.subr.mxu0 0.0
    %111 = vmatpush1.msra.mxu0 0.0
    %112 = vmatprep.subr.mxu0 0.0
    %113 = vmatpush1.msra.mxu0 0.0
    %114 = vmatprep.subr.mxu0 0.0
    %115 = vmatpush1.msra.mxu0 0.0
    %116 = vmatprep.subr.mxu0 0.0
    %117 = vmatpush1.msra.mxu0 0.0
    %118 = vmatprep.subr.mxu0 0.0
    %119 = vmatpush1.msra.mxu0 0.0
    %120 = vmatprep.subr.mxu0 0.0
    %121 = vmatpush1.msra.mxu0 0.0
    %122 = vmatprep.mubr.f32.mxu0 0.0
    %123 = vmatmul.mubr.f32.gmra.mrb[0].mxu0 %v40
    %v124 = vpop.f32.mrb[0].mxu0
    %v125 = vadd.f32 0.0, %v124
    %v126 = vpop.f32.mrb[0].mxu0
    %127 = vmatprep.mubr.f32.mxu0 0.0
    %128 = vmatmul.mubr.f32.gmra.mrb[0].mxu0 %v41
    %v129 = vpop.f32.mrb[0].mxu0
    %v130 = vadd.f32 0.0, %v129
    %v131 = vpop.f32.mrb[0].mxu0
    %132 = vdwg.mxu0
    %133 = vst [vmem:[#allocation7] sm:$0xff] %v125
    %134 = vst [vmem:[#allocation7 + $0x8] sm:$0xff] %v130
    // Predicated region
    $region18: #{tpu_custom_call.1} parent=1 // pred_check
      _
    $region19: #{tpu_custom_call.1} parent=1 // pred_check_branch
      %136 = sbr.rel (0) target = $region21
    $region20: #{tpu_custom_call.1} parent=1 // pred_region
      %s138 = ssub.s32 256, 256
      %139 = vsyncadd [#allocation4], %s138
      %s140 = sshll.u32 [#allocation7], 4
      %s141 = int_to_ptr.vmem [resolvable:$true] %s140
      %146 = dma.vmem_to_hbm [thread:$0]  %s141, 256, %s2, [#allocation4], 128, 128, 8
    $region21: #{tpu_custom_call.1} parent=1 // pred_fallthru
      _
    // Predicated region
    $region22: #{tpu_custom_call.1} parent=1 // pred_check
      _
    $region23: #{tpu_custom_call.1} parent=1 // pred_check_branch
      %148 = sbr.rel (0) target = $region25
    $region24: #{tpu_custom_call.1} parent=1 // pred_region
      %149 = dma.done [#allocation4], 256
    $region25: #{tpu_custom_call.1} parent=1 // pred_fallthru
      _
    %150 = vsyncpa [#allocation3], 1
    %151 = vsyncpa [#allocation6], 1
    %152 = vsyncpa [#allocation4], 1

</llo_original>
